<compile_context>
chip_gen: v7x
topology: tpu7x:2x2x1
jax: 0.10.0
libtpu: 0.0.40
codegen_flags: <defaults>
</compile_context>

<pallas_src>
import numpy as np

import jax
import jax.numpy as jnp
from jax.experimental import pallas as pl
from jax.experimental.pallas import tpu as pltpu


def _word_dropout_kernel(m_ref, x_ref, o_ref):
    # m_ref: (TW, 1) per-word keep mask already in x.dtype.
    # Broadcast across the lane (feature) axis and multiply.
    o_ref[...] = x_ref[...] * m_ref[...]


def _round_up(n: int, m: int) -> int:
    return ((n + m - 1) // m) * m


def _round_down(n: int, m: int) -> int:
    return (n // m) * m


def _sublane_pack(dtype) -> int:
    # Rows per packed sublane group: f32 -> 8, bf16/f16 -> 16, int8/fp8 -> 32.
    return {4: 8, 2: 16, 1: 32}.get(jnp.dtype(dtype).itemsize, 8)


_TILE_BYTES = 4 * 1024 * 1024      # ~4 MiB per tile; 2 in + 2 out bufs ~ 16 MiB
_MAX_TF_ELEMS = 8192               # F-tile cap (multiple of 128); above -> tile F
_VMEM_LIMIT_BYTES = 32 * 1024 * 1024  # covers 4 MiB tiles on v5e's 16 MiB default


def word_dropout(x, key, dropout_rate: float = 0.05, training: bool = True,
                 *, use_pallas=None, donate_x: bool = False):
    """Pallas implementation of flair's WordDropout.forward.

    x:   (W, ...) array — dim 0 is the word axis that gets dropped.
    key: jax.random PRNGKey used to draw the per-word Bernoulli mask.
    """
    if (not training) or (not dropout_rate):
        return x

    w = x.shape[0]
    f = int(np.prod(x.shape[1:])) if x.ndim > 1 else 1
    keep_prob = 1.0 - float(dropout_rate)

    # Per-word keep mask (W, 1), same as torch `new(W,1,1).bernoulli_(1-p)`.
    keep = jax.random.bernoulli(key, p=keep_prob, shape=(w, 1)).astype(x.dtype)

    # Small-input fallback: pallas_call launch + DMA-setup overhead dwarfs the
    # HBM traffic for tiny tensors.
    itemsize = jnp.dtype(x.dtype).itemsize
    if use_pallas is None:
        use_pallas = int(x.size) * itemsize >= (256 * 1024)
    if not use_pallas:
        return x * keep.reshape((w,) + (1,) * (x.ndim - 1))

    x2d = x.reshape(w, f)
    sub = _sublane_pack(x.dtype)

    # ---- tile selection (no padding; Pallas masks edge tiles) ----
    # Feature tile: full width when it fits (contiguous-row DMA, lane-dense
    # stores, smallest grid); otherwise a 128-multiple cap.
    tf = f if f <= _MAX_TF_ELEMS else _MAX_TF_ELEMS

    # Word tile: fill ~_TILE_BYTES, rounded to the dtype's sublane pack.
    row_bytes = max(1, tf * itemsize)
    tw = max(sub, _round_down(_TILE_BYTES // row_bytes, sub))
    if tw >= w:
        tw = w  # block == full dim is always legal, regardless of alignment.

    # v7x has 2 TensorCores per chip: avoid a (1, 1) grid when W is big enough
    # to split (harmless extra grid step on single-TC v5e/v6e).
    if pl.cdiv(w, tw) * pl.cdiv(f, tf) == 1 and w >= 2 * sub:
        tw = _round_up(pl.cdiv(w, 2), sub)

    # F innermost so the (tw, 1) mask block index stays constant across inner
    # iterations and its DMA is not re-issued.
    grid = (pl.cdiv(w, tw), pl.cdiv(f, tf))

    call_kwargs = {}
    if donate_x:
        # x2d is input index 1 (after the mask); write the result in place.
        call_kwargs["input_output_aliases"] = {1: 0}

    out2d = pl.pallas_call(
        _word_dropout_kernel,
        out_shape=jax.ShapeDtypeStruct((w, f), x.dtype),
        grid=grid,
        in_specs=[
            pl.BlockSpec((tw, 1), lambda wi, fi: (wi, 0)),    # keep mask
            pl.BlockSpec((tw, tf), lambda wi, fi: (wi, fi)),  # x tile
        ],
        out_specs=pl.BlockSpec((tw, tf), lambda wi, fi: (wi, fi)),
        compiler_params=pltpu.CompilerParams(
            dimension_semantics=("parallel", "parallel"),
            vmem_limit_bytes=_VMEM_LIMIT_BYTES,
        ),
        **call_kwargs,
    )(keep, x2d)

    return out2d.reshape(x.shape)


def _check_case(x, key, rate):
    """Run Pallas path vs. plain-XLA fallback with the same mask key."""
    y = jax.block_until_ready(
        word_dropout(x, key, dropout_rate=rate, training=True, use_pallas=True))
    y_ref = jax.block_until_ready(
        word_dropout(x, key, dropout_rate=rate, training=True, use_pallas=False))
    assert np.allclose(np.asarray(y, dtype=np.float32),
                       np.asarray(y_ref, dtype=np.float32)), "kernel != XLA reference"

    # Every word-row must be either kept exactly or fully zeroed.
    w = x.shape[0]
    xr = np.asarray(x, dtype=np.float32).reshape(w, -1)
    yr = np.asarray(y, dtype=np.float32).reshape(w, -1)
    for i in range(w):
        kept = np.allclose(yr[i], xr[i])
        dropped = np.allclose(yr[i], 0.0)
        assert kept or dropped, f"row {i} is neither kept nor dropped"
    return y


if __name__ == "__main__":
    root = jax.random.PRNGKey(0)
    key_x, key_m1, key_x2, key_m2, key_x3, key_m3 = jax.random.split(root, 6)

    # (words=8, batch=2, hidden=32) f32 — shape consistent with flair usage.
    x = jax.random.normal(key_x, (8, 2, 32), dtype=jnp.float32)
    _check_case(x, key_m1, rate=0.5)

    # Misaligned W and F (exercises unpadded edge-tile masking + W split).
    x2 = jax.random.normal(key_x2, (20, 3, 50), dtype=jnp.float32)
    _check_case(x2, key_m2, rate=0.3)

    # bf16 path (sublane pack = 16).
    x3 = jax.random.normal(key_x3, (24, 4, 48), dtype=jnp.float32).astype(jnp.bfloat16)
    _check_case(x3, key_m3, rate=0.25)

    # Eval mode / rate == 0 is identity.
    y_eval = jax.block_until_ready(
        word_dropout(x, key_m1, dropout_rate=0.5, training=False))
    assert np.allclose(np.asarray(y_eval), np.asarray(x))
    y_zero = jax.block_until_ready(
        word_dropout(x, key_m1, dropout_rate=0.0, training=True))
    assert np.allclose(np.asarray(y_zero), np.asarray(x))

    print("KERNEL_OK")
</pallas_src>

<mosaic_0001>
module attributes {stable_mosaic.version = 11 : i64} {
  func.func @_word_dropout_kernel(%arg0: i32, %arg1: i32, %arg2: memref<8x1xf32, #tpu.memory_space<vmem>>, %arg3: memref<8x64xf32, #tpu.memory_space<vmem>>, %arg4: memref<8x64xf32, #tpu.memory_space<vmem>>) attributes {dimension_semantics = [#tpu.dimension_semantics<parallel>, #tpu.dimension_semantics<parallel>], iteration_bounds = array<i64: 1, 1>, scalar_prefetch = 0 : i64, scratch_operands = 0 : i64, tpu.core_type = #tpu.core_type<tc>, window_params = [{transform_indices = @transform_0, window_bounds = array<i64: 8, 1>}, {transform_indices = @transform_1, window_bounds = array<i64: 8, 64>}, {transform_indices = @transform_2, window_bounds = array<i64: 8, 64>}]} {
    %c0 = arith.constant 0 : index
    %c0_0 = arith.constant 0 : index
    %0 = vector.load %arg3[%c0, %c0_0] : memref<8x64xf32, #tpu.memory_space<vmem>>, vector<8x64xf32>
    %c0_1 = arith.constant 0 : index
    %c0_2 = arith.constant 0 : index
    %1 = vector.load %arg2[%c0_1, %c0_2] : memref<8x1xf32, #tpu.memory_space<vmem>>, vector<8x1xf32>
    %2 = vector.broadcast %1 : vector<8x1xf32> to vector<8x64xf32>
    %3 = arith.mulf %0, %2 : vector<8x64xf32>
    %c0_3 = arith.constant 0 : index
    %c0_4 = arith.constant 0 : index
    %4 = vector.load %arg4[%c0_3, %c0_4] : memref<8x64xf32, #tpu.memory_space<vmem>>, vector<8x64xf32>
    tpu.vector_store %arg4[%c0_3, %c0_4], %3 {strides = array<i32>} : memref<8x64xf32, #tpu.memory_space<vmem>>, vector<8x64xf32>,
    return
  }
  func.func @transform_0(%arg0: i32, %arg1: i32) -> (i32, i32) {
    %c0_i32 = arith.constant 0 : i32
    %c0_i32_0 = arith.constant 0 : i32
    return %arg0, %c0_i32 : i32, i32
  }
  func.func @transform_1(%arg0: i32, %arg1: i32) -> (i32, i32) {
    %c0_i32 = arith.constant 0 : i32
    return %arg0, %arg1 : i32, i32
  }
  func.func @transform_2(%arg0: i32, %arg1: i32) -> (i32, i32) {
    %c0_i32 = arith.constant 0 : i32
    return %arg0, %arg1 : i32, i32
  }
}

</mosaic_0001>

<llo_original>
// kernel: tpu_custom_call.1
$region0: #{tpu_custom_call.1}
  #allocation0 [shape = 'u32[]', space=smem, size = 0x4, offset = 0x4, fixed_abs, tag = 'smem constant byte address 0x4 - core index']
  #allocation1 [shape = 'u32[144,128]{1,0:T(1,128)}', space=vmem, size = 0x12000, scoped, tag = 'internal scratch']
  %s0 = inlined_call_operand.vmem [shape: f32[8,1], index: 0, kind: input, shape index: {}]
  %s1 = inlined_call_operand.vmem [shape: f32[8,64], index: 1, kind: input, shape index: {}]
  %s2 = inlined_call_operand.hbm [shape: f32[8,64], index: 2, kind: output, shape index: {}]
  %s3 = sld [smem:[#allocation0]]
  $region18: #{tpu_custom_call.1} parent=0
    _
  %s5 = ssub.s32 1, %s3
  %s6 = scalar_select 0, %s5, %s3
  $region1: #{tpu_custom_call.1} parent=0
    #allocation2 [shape = 'u8[4096]{0}', space=vmem, size = 0x1000, scoped, tag = 'output window, operand 0, single buffered']
    #allocation3 [shape = 's32[1]{0}', space=sflag, size = 0x4, scoped, tag = 'scoped memory for tpu_custom_call.1']
    %7 = vsyncpa [#allocation3], 0
    // Predicated region
    $region2: #{tpu_custom_call.1} parent=1 // pred_check
      _
    $region3: #{tpu_custom_call.1} parent=1 // pred_check_branch
      %9 = sbr.rel (0) target = $region5
    $region4: #{tpu_custom_call.1} parent=1 // pred_region
      _
    $region5: #{tpu_custom_call.1} parent=1 // pred_fallthru
      _
    // Predicated region
    $region6: #{tpu_custom_call.1} parent=1 // pred_check
      _
    $region7: #{tpu_custom_call.1} parent=1 // pred_check_branch
      %11 = sbr.rel (0) target = $region9
    $region8: #{tpu_custom_call.1} parent=1 // pred_region
      _
    $region9: #{tpu_custom_call.1} parent=1 // pred_fallthru
      _
    %v12 = vld [vmem:[%s1] sm:$0xff]
    %v13 = vld [vmem:[%s0] sm:$0xff]
    %15 = vset.pattern.permute.xlu0 0
    %16 = vperm.xlu0 %15, %v13
    %v17 = vpop.permute.xlu0 %16
    %v19 = vmul.f32 %v12, %v17
    %vm20 = vcmask 523264
    %21 = vst.msk [vmem:[#allocation2] sm:$0xff] %vm20, %v19
    // Predicated region
    $region10: #{tpu_custom_call.1} parent=1 // pred_check
      _
    $region11: #{tpu_custom_call.1} parent=1 // pred_check_branch
      %23 = sbr.rel (0) target = $region13
    $region12: #{tpu_custom_call.1} parent=1 // pred_region
      %s25 = ssub.s32 128, 128
      %26 = vsyncadd [#allocation3], %s25
      %s28 = sshll.u32 [#allocation2], 4
      %s29 = int_to_ptr.vmem [resolvable:$true] %s28
      %31 = dma.vmem_to_hbm [thread:$0]  %s29, 128, %s2, [#allocation3]
    $region13: #{tpu_custom_call.1} parent=1 // pred_fallthru
      _
    // Predicated region
    $region14: #{tpu_custom_call.1} parent=1 // pred_check
      _
    $region15: #{tpu_custom_call.1} parent=1 // pred_check_branch
      %33 = sbr.rel (0) target = $region17
    $region16: #{tpu_custom_call.1} parent=1 // pred_region
      %34 = dma.done [#allocation3], 128
    $region17: #{tpu_custom_call.1} parent=1 // pred_fallthru
      _
    %35 = vsyncpa [#allocation3], 1

</llo_original>
